<compile_context>
chip_gen: v7x
topology: tpu7x:2x2x1
jax: 0.10.0
libtpu: 0.0.40
codegen_flags: <defaults>
</compile_context>

<pallas_src>
import jax
import jax.numpy as jnp
from jax.experimental import pallas as pl
from jax.experimental.pallas import tpu as pltpu

IN_FEATURES = 20
HIDDEN = 256
OUT_FEATURES = 10


def _round_up(n, m):
    return ((n + m - 1) // m) * m


def _ceil_div(a, b):
    return -(-a // b)


def mlp_kernel(x_ref, w1_ref, b1_ref, w2_ref, b2_ref, o_ref):
    # Layer 1: (tm, 20) @ (20, 256) on the MXU with f32 accumulation.
    h = jnp.dot(x_ref[...], w1_ref[...], preferred_element_type=jnp.float32)
    h = jnp.maximum(h + b1_ref[...], 0.0)  # bias + ReLU on the VPU
    # Layer 2: (tm, 256) @ (256, 10); h stays in VMEM/vregs (no HBM round trip).
    o = jnp.dot(h, w2_ref[...], preferred_element_type=jnp.float32)
    o_ref[...] = (o + b2_ref[...]).astype(o_ref.dtype)


def mlp_forward(x, w1, b1, w2, b2, *, tm=2048, min_grid_steps=4):
    """x: [B, 20] f32; w1: [20, 256]; b1: [256]; w2: [256, 10]; b2: [10].

    Returns [B, 10] f32, matching relu(x @ w1 + b1) @ w2 + b2.
    """
    B, fin = x.shape
    hid = w1.shape[1]
    fout = w2.shape[1]

    # Balanced batch tiling:
    #  - tiles up to `tm` rows to amortize per-grid-step overhead,
    #  - aim for >= min_grid_steps steps when the batch allows (>= 2 per
    #    TensorCore on v7x dual-TC),
    #  - balance tile sizes so the trailing pad is <= one 8-row sliver instead
    #    of a nearly-empty extra tile.
    max_steps = _ceil_div(B, 8)
    num_steps = max(_ceil_div(B, tm), min(min_grid_steps, max_steps))
    tm_eff = _round_up(_ceil_div(B, num_steps), 8)
    num_steps = _ceil_div(B, tm_eff)
    b_pad = num_steps * tm_eff

    # Only the batch dim is (possibly) padded; x keeps its real 20-column f32
    # layout in HBM — no bf16 cast pass, no 20->128 column pad.
    if b_pad != B:
        x_in = jnp.zeros((b_pad, fin), x.dtype).at[:B, :].set(x)
    else:
        x_in = x

    w1_f = w1.astype(jnp.float32)
    b1_f = b1.astype(jnp.float32).reshape(1, hid)
    w2_f = w2.astype(jnp.float32)
    b2_f = b2.astype(jnp.float32).reshape(1, fout)

    out = pl.pallas_call(
        mlp_kernel,
        out_shape=jax.ShapeDtypeStruct((b_pad, fout), jnp.float32),
        grid=(num_steps,),
        in_specs=[
            # Streaming batch tile (tm, 20): last dim equals the full array
            # dim, which is legal even though 20 is not a multiple of 128.
            pl.BlockSpec((tm_eff, fin), lambda i: (i, 0)),
            # Weights / biases: tiny (~150 KiB total), resident across the grid.
            pl.BlockSpec((fin, hid), lambda i: (0, 0)),
            pl.BlockSpec((1, hid), lambda i: (0, 0)),
            pl.BlockSpec((hid, fout), lambda i: (0, 0)),
            pl.BlockSpec((1, fout), lambda i: (0, 0)),
        ],
        # Narrow 10-wide f32 output block (last dim == full array dim).
        out_specs=pl.BlockSpec((tm_eff, fout), lambda i: (i, 0)),
        compiler_params=pltpu.CompilerParams(
            # Only a real lever on v7x's dual TensorCore; harmless elsewhere.
            dimension_semantics=("parallel",),
        ),
    )(x_in, w1_f, b1_f, w2_f, b2_f)

    return out[:B, :] if b_pad != B else out


def init_params(key):
    """Deterministic init matching the PyTorch module's shapes.

    PyTorch stores Linear weights as [out, in]; we keep [in, out] so the kernel
    multiplies without a transpose (same math as x @ W.T + b).
    """
    k1, k2, k3, k4 = jax.random.split(key, 4)
    in1, hid, out = IN_FEATURES, HIDDEN, OUT_FEATURES
    lim1 = 1.0 / jnp.sqrt(in1)
    lim2 = 1.0 / jnp.sqrt(hid)
    w1 = jax.random.uniform(k1, (in1, hid), jnp.float32, -lim1, lim1)
    b1 = jax.random.uniform(k2, (hid,), jnp.float32, -lim1, lim1)
    w2 = jax.random.uniform(k3, (hid, out), jnp.float32, -lim2, lim2)
    b2 = jax.random.uniform(k4, (out,), jnp.float32, -lim2, lim2)
    return w1, b1, w2, b2


if __name__ == "__main__":
    key = jax.random.PRNGKey(0)
    kx, kp = jax.random.split(key)
    batch = 12  # exercises both the multi-step grid and the batch-row padding
    x = jax.random.normal(kx, (batch, IN_FEATURES), jnp.float32)
    w1, b1, w2, b2 = init_params(kp)

    out = mlp_forward(x, w1, b1, w2, b2)
    out = jax.block_until_ready(out)

    # Pure-JAX f32 reference. The kernel keeps f32 data end-to-end; the only
    # quantization is the MXU's default-precision f32 matmul, so tolerance is
    # kept loose enough to absorb that across TPU generations.
    ref = jnp.maximum(x @ w1 + b1[None, :], 0.0) @ w2 + b2[None, :]
    assert out.shape == (batch, OUT_FEATURES)
    assert jnp.allclose(out, ref, atol=2e-2, rtol=2e-2), (
        float(jnp.max(jnp.abs(out - ref))))

    print("KERNEL_OK")
</pallas_src>

<mosaic_0001>
module attributes {stable_mosaic.version = 11 : i64} {
  func.func @mlp_kernel(%arg0: i32, %arg1: memref<8x20xf32, #tpu.memory_space<vmem>>, %arg2: memref<20x256xf32, #tpu.memory_space<vmem>>, %arg3: memref<1x256xf32, #tpu.memory_space<vmem>>, %arg4: memref<256x10xf32, #tpu.memory_space<vmem>>, %arg5: memref<1x10xf32, #tpu.memory_space<vmem>>, %arg6: memref<8x10xf32, #tpu.memory_space<vmem>>) attributes {dimension_semantics = [#tpu.dimension_semantics<parallel>], iteration_bounds = array<i64: 2>, scalar_prefetch = 0 : i64, scratch_operands = 0 : i64, tpu.core_type = #tpu.core_type<tc>, window_params = [{transform_indices = @transform_0, window_bounds = array<i64: 8, 20>}, {pipeline_mode = #tpu.pipeline_mode<synchronous>, transform_indices = @transform_1, window_bounds = array<i64: 20, 256>}, {pipeline_mode = #tpu.pipeline_mode<synchronous>, transform_indices = @transform_2, window_bounds = array<i64: 1, 256>}, {pipeline_mode = #tpu.pipeline_mode<synchronous>, transform_indices = @transform_3, window_bounds = array<i64: 256, 10>}, {pipeline_mode = #tpu.pipeline_mode<synchronous>, transform_indices = @transform_4, window_bounds = array<i64: 1, 10>}, {transform_indices = @transform_5, window_bounds = array<i64: 8, 10>}]} {
    %c0 = arith.constant 0 : index
    %c0_0 = arith.constant 0 : index
    %0 = vector.load %arg1[%c0, %c0_0] : memref<8x20xf32, #tpu.memory_space<vmem>>, vector<8x20xf32>
    %c0_1 = arith.constant 0 : index
    %c0_2 = arith.constant 0 : index
    %1 = vector.load %arg2[%c0_1, %c0_2] : memref<20x256xf32, #tpu.memory_space<vmem>>, vector<20x256xf32>
    %cst = arith.constant dense<0.000000e+00> : vector<8x256xf32>
    %2 = tpu.matmul %0, %1, %cst {dimension_numbers = #tpu.dot_dimension_numbers<[1], [0], [0], [1], [0, 0, 1, 1], [], []>} : vector<8x20xf32>, vector<20x256xf32>, vector<8x256xf32> -> vector<8x256xf32>
    %c0_3 = arith.constant 0 : index
    %c0_4 = arith.constant 0 : index
    %3 = vector.load %arg3[%c0_3, %c0_4] : memref<1x256xf32, #tpu.memory_space<vmem>>, vector<1x256xf32>
    %4 = vector.broadcast %3 : vector<1x256xf32> to vector<8x256xf32>
    %5 = arith.addf %2, %4 : vector<8x256xf32>
    %cst_5 = arith.constant 0.000000e+00 : f32
    %6 = vector.broadcast %cst_5 : f32 to vector<8x256xf32>
    %7 = arith.maximumf %5, %6 : vector<8x256xf32>
    %c0_6 = arith.constant 0 : index
    %c0_7 = arith.constant 0 : index
    %8 = vector.load %arg4[%c0_6, %c0_7] : memref<256x10xf32, #tpu.memory_space<vmem>>, vector<256x10xf32>
    %cst_8 = arith.constant dense<0.000000e+00> : vector<8x10xf32>
    %9 = tpu.matmul %7, %8, %cst_8 {dimension_numbers = #tpu.dot_dimension_numbers<[1], [0], [0], [1], [0, 0, 1, 1], [], []>} : vector<8x256xf32>, vector<256x10xf32>, vector<8x10xf32> -> vector<8x10xf32>
    %c0_9 = arith.constant 0 : index
    %c0_10 = arith.constant 0 : index
    %10 = vector.load %arg5[%c0_9, %c0_10] : memref<1x10xf32, #tpu.memory_space<vmem>>, vector<1x10xf32>
    %11 = vector.broadcast %10 : vector<1x10xf32> to vector<8x10xf32>
    %12 = arith.addf %9, %11 : vector<8x10xf32>
    %c0_11 = arith.constant 0 : index
    %c0_12 = arith.constant 0 : index
    %13 = vector.load %arg6[%c0_11, %c0_12] : memref<8x10xf32, #tpu.memory_space<vmem>>, vector<8x10xf32>
    tpu.vector_store %arg6[%c0_11, %c0_12], %12 {strides = array<i32>} : memref<8x10xf32, #tpu.memory_space<vmem>>, vector<8x10xf32>,
    return
  }
  func.func @transform_0(%arg0: i32) -> (i32, i32) {
    %c0_i32 = arith.constant 0 : i32
    %c0_i32_0 = arith.constant 0 : i32
    return %arg0, %c0_i32 : i32, i32
  }
  func.func @transform_1(%arg0: i32) -> (i32, i32) {
    %c0_i32 = arith.constant 0 : i32
    %c0_i32_0 = arith.constant 0 : i32
    %c0_i32_1 = arith.constant 0 : i32
    return %c0_i32, %c0_i32_0 : i32, i32
  }
  func.func @transform_2(%arg0: i32) -> (i32, i32) {
    %c0_i32 = arith.constant 0 : i32
    %c0_i32_0 = arith.constant 0 : i32
    %c0_i32_1 = arith.constant 0 : i32
    return %c0_i32, %c0_i32_0 : i32, i32
  }
  func.func @transform_3(%arg0: i32) -> (i32, i32) {
    %c0_i32 = arith.constant 0 : i32
    %c0_i32_0 = arith.constant 0 : i32
    %c0_i32_1 = arith.constant 0 : i32
    return %c0_i32, %c0_i32_0 : i32, i32
  }
  func.func @transform_4(%arg0: i32) -> (i32, i32) {
    %c0_i32 = arith.constant 0 : i32
    %c0_i32_0 = arith.constant 0 : i32
    %c0_i32_1 = arith.constant 0 : i32
    return %c0_i32, %c0_i32_0 : i32, i32
  }
  func.func @transform_5(%arg0: i32) -> (i32, i32) {
    %c0_i32 = arith.constant 0 : i32
    %c0_i32_0 = arith.constant 0 : i32
    return %arg0, %c0_i32 : i32, i32
  }
}

</mosaic_0001>

<llo_original>
// kernel: tpu_custom_call.1
$region0: #{tpu_custom_call.1}
  #allocation0 [shape = 'u32[]', space=smem, size = 0x4, offset = 0x4, fixed_abs, tag = 'smem constant byte address 0x4 - core index']
  #allocation1 [shape = 'u32[144,128]{1,0:T(1,128)}', space=vmem, size = 0x12000, scoped, tag = 'internal scratch']
  %s0 = inlined_call_operand.vmem [shape: f32[16,20], index: 0, kind: input, shape index: {}]
  %s1 = inlined_call_operand.vmem [shape: f32[20,256], index: 1, kind: input, shape index: {}]
  %s2 = inlined_call_operand.vmem [shape: f32[1,256], index: 2, kind: input, shape index: {}]
  %s3 = inlined_call_operand.vmem [shape: f32[256,10], index: 3, kind: input, shape index: {}]
  %s4 = inlined_call_operand.vmem [shape: f32[1,10], index: 4, kind: input, shape index: {}]
  %s5 = inlined_call_operand.hbm [shape: f32[16,10], index: 5, kind: output, shape index: {}]
  %s6 = sld [smem:[#allocation0]]
  $region53: #{tpu_custom_call.1} parent=0
    _
  %s8 = ssub.s32 1, %s6
  %s9 = scalar_select 0, %s8, %s6
  $region1: #{tpu_custom_call.1} parent=0
    #allocation2 [shape = 'u8[8192]{0}', space=vmem, size = 0x2000, scoped, tag = 'output window, operand 0']
    #allocation3 [shape = 's32[2]{0}', space=sflag, size = 0x8, scoped, tag = 'scoped memory for tpu_custom_call.1']
    %10 = vsyncpa [#allocation3], 0
    %s11 = scalar_lea.sflag [#allocation3], 1
    %12 = vsyncpa %s11, 0
    loop: start=0, step=1, limit=4
    $region2: #{tpu_custom_call.1} parent=1 // loop_pre_header
      _
    $region3: #{tpu_custom_call.1} parent=1 // loop_header
      %s14 = sphi 0, %s18
      %p15 = scmp.ge.s32.totalorder %s14, 4
      %s24 = sphi 0, %s26
      %s27 = sphi 0, %s24
      %s28 = sphi 0, %s27
      %s44 = sphi 0, %s28
      %s48 = sphi 0, %s48
      %s50 = sphi 0, %s48
      %s51 = sphi 0, %s50
      %s65 = sphi 0, %s51
      %s69 = sphi 0, %s69
      %s71 = sphi 0, %s69
      %s72 = sphi 0, %s71
      %s86 = sphi 0, %s72
      %s90 = sphi 0, %s90
      %s92 = sphi 0, %s90
      %s93 = sphi 0, %s92
      %s107 = sphi 0, %s93
      %s111 = sphi 0, %s111
      %s113 = sphi 0, %s111
      %s114 = sphi 0, %s113
      %s128 = sphi 0, %s114
      %s134 = sphi 0, %s136
      %s137 = sphi 0, %s134
      %s138 = sphi 0, %s137
      %s154 = sphi 0, %s138
    $region4: #{tpu_custom_call.1} parent=1 // loop_header_branch
      %17 = sbr.rel (%p15) target = $region8
    $region5: #{tpu_custom_call.1} parent=1 // loop_body
      %s19 = ssub.s32 %s14, 1
      %s20 = ssub.s32 %s14, 2
      %s21 = sadd.s32 %s14, 1
      %s22 = ssub.s32 %s14, %s21
      %p23 = scmp.eq.s32.totalorder %s22, 0
      %s25 = sadd.s32 %s24, 1
      %s26 = scalar_select %p23, %s24, %s25
      %p29 = pneg %p23
      %p30 = scmp.eq.s32.totalorder %s14, 1
      %p31 = por %p29, %p30
      %p32 = scmp.ne.s32.totalorder %s24, %s27
      %p33 = scmp.eq.s32.totalorder %s14, 0
      %p34 = por %p32, %p33
      %p35 = scmp.ne.s32.totalorder %s24, %s27
      %p36 = scmp.eq.s32.totalorder %s19, 1
      %p37 = por %p35, %p36
      %p38 = scmp.ne.s32.totalorder %s27, %s28
      %p39 = scmp.eq.s32.totalorder %s19, 0
      %p40 = por %p38, %p39
      %p41 = scmp.ne.s32.totalorder %s27, %s28
      %p42 = scmp.eq.s32.totalorder %s20, 1
      %p43 = por %p41, %p42
      %p45 = scmp.ne.s32.totalorder %s28, %s44
      %p46 = scmp.eq.s32.totalorder %s20, 0
      %p47 = por %p45, %p46
      %s49 = sadd.s32 %s48, 1
      %p52 = scmp.eq.s32.totalorder %s14, 1
      %p53 = scmp.ne.s32.totalorder %s48, %s50
      %p54 = scmp.eq.s32.totalorder %s14, 0
      %p55 = por %p53, %p54
      %p56 = scmp.ne.s32.totalorder %s48, %s50
      %p57 = scmp.eq.s32.totalorder %s19, 1
      %p58 = por %p56, %p57
      %p59 = scmp.ne.s32.totalorder %s50, %s51
      %p60 = scmp.eq.s32.totalorder %s19, 0
      %p61 = por %p59, %p60
      %p62 = scmp.ne.s32.totalorder %s50, %s51
      %p63 = scmp.eq.s32.totalorder %s20, 1
      %p64 = por %p62, %p63
      %p66 = scmp.ne.s32.totalorder %s51, %s65
      %p67 = scmp.eq.s32.totalorder %s20, 0
      %p68 = por %p66, %p67
      %s70 = sadd.s32 %s69, 1
      %p73 = scmp.eq.s32.totalorder %s14, 1
      %p74 = scmp.ne.s32.totalorder %s69, %s71
      %p75 = scmp.eq.s32.totalorder %s14, 0
      %p76 = por %p74, %p75
      %p77 = scmp.ne.s32.totalorder %s69, %s71
      %p78 = scmp.eq.s32.totalorder %s19, 1
      %p79 = por %p77, %p78
      %p80 = scmp.ne.s32.totalorder %s71, %s72
      %p81 = scmp.eq.s32.totalorder %s19, 0
      %p82 = por %p80, %p81
      %p83 = scmp.ne.s32.totalorder %s71, %s72
      %p84 = scmp.eq.s32.totalorder %s20, 1
      %p85 = por %p83, %p84
      %p87 = scmp.ne.s32.totalorder %s72, %s86
      %p88 = scmp.eq.s32.totalorder %s20, 0
      %p89 = por %p87, %p88
      %s91 = sadd.s32 %s90, 1
      %p94 = scmp.eq.s32.totalorder %s14, 1
      %p95 = scmp.ne.s32.totalorder %s90, %s92
      %p96 = scmp.eq.s32.totalorder %s14, 0
      %p97 = por %p95, %p96
      %p98 = scmp.ne.s32.totalorder %s90, %s92
      %p99 = scmp.eq.s32.totalorder %s19, 1
      %p100 = por %p98, %p99
      %p101 = scmp.ne.s32.totalorder %s92, %s93
      %p102 = scmp.eq.s32.totalorder %s19, 0
      %p103 = por %p101, %p102
      %p104 = scmp.ne.s32.totalorder %s92, %s93
      %p105 = scmp.eq.s32.totalorder %s20, 1
      %p106 = por %p104, %p105
      %p108 = scmp.ne.s32.totalorder %s93, %s107
      %p109 = scmp.eq.s32.totalorder %s20, 0
      %p110 = por %p108, %p109
      %s112 = sadd.s32 %s111, 1
      %p115 = scmp.eq.s32.totalorder %s14, 1
      %p116 = scmp.ne.s32.totalorder %s111, %s113
      %p117 = scmp.eq.s32.totalorder %s14, 0
      %p118 = por %p116, %p117
      %p119 = scmp.ne.s32.totalorder %s111, %s113
      %p120 = scmp.eq.s32.totalorder %s19, 1
      %p121 = por %p119, %p120
      %p122 = scmp.ne.s32.totalorder %s113, %s114
      %p123 = scmp.eq.s32.totalorder %s19, 0
      %p124 = por %p122, %p123
      %p125 = scmp.ne.s32.totalorder %s113, %s114
      %p126 = scmp.eq.s32.totalorder %s20, 1
      %p127 = por %p125, %p126
      %p129 = scmp.ne.s32.totalorder %s114, %s128
      %p130 = scmp.eq.s32.totalorder %s20, 0
      %p131 = por %p129, %p130
      %s132 = ssub.s32 %s14, %s21
      %p133 = scmp.eq.s32.totalorder %s132, 0
      %s135 = sadd.s32 %s134, 1
      %s136 = scalar_select %p133, %s134, %s135
      %p139 = pneg %p133
      %p140 = scmp.eq.s32.totalorder %s14, 1
      %p141 = por %p139, %p140
      %p142 = scmp.ne.s32.totalorder %s134, %s137
      %p143 = scmp.eq.s32.totalorder %s14, 0
      %p144 = por %p142, %p143
      %p145 = scmp.ne.s32.totalorder %s134, %s137
      %p146 = scmp.eq.s32.totalorder %s19, 1
      %p147 = por %p145, %p146
      %p148 = scmp.ne.s32.totalorder %s137, %s138
      %p149 = scmp.eq.s32.totalorder %s19, 0
      %p150 = por %p148, %p149
      %p151 = scmp.ne.s32.totalorder %s137, %s138
      %p152 = scmp.eq.s32.totalorder %s20, 1
      %p153 = por %p151, %p152
      %p155 = scmp.ne.s32.totalorder %s138, %s154
      %p156 = scmp.eq.s32.totalorder %s20, 0
      %p157 = por %p155, %p156
      %p158 = scmp.le.s32.totalorder 1, %s14
      %p159 = scmp.lt.s32.totalorder %s14, 3
      %p160 = pnand %p158, %p159
      %p161 = pneg %p160
      // Predicated region
      $region9: #{tpu_custom_call.1} parent=5 // pred_check
        _
      $region10: #{tpu_custom_call.1} parent=5 // pred_check_branch
        %163 = sbr.rel (%p160) target = $region12
      $region11: #{tpu_custom_call.1} parent=5 // pred_region
        %s164 = ssub.s32 %s14, 1
        // Predicated region
        $region13: #{tpu_custom_call.1} parent=11 // pred_check
          %p165 = pneg %p61
        $region14: #{tpu_custom_call.1} parent=11 // pred_check_branch
          %167 = sbr.rel (%p165) target = $region16
        $region15: #{tpu_custom_call.1} parent=11 // pred_region
          _
        $region16: #{tpu_custom_call.1} parent=11 // pred_fallthru
          _
        // Predicated region
        $region17: #{tpu_custom_call.1} parent=11 // pred_check
          %p168 = pneg %p82
        $region18: #{tpu_custom_call.1} parent=11 // pred_check_branch
          %170 = sbr.rel (%p168) target = $region20
        $region19: #{tpu_custom_call.1} parent=11 // pred_region
          _
        $region20: #{tpu_custom_call.1} parent=11 // pred_fallthru
          _
        // Predicated region
        $region21: #{tpu_custom_call.1} parent=11 // pred_check
          %p171 = pneg %p103
        $region22: #{tpu_custom_call.1} parent=11 // pred_check_branch
          %173 = sbr.rel (%p171) target = $region24
        $region23: #{tpu_custom_call.1} parent=11 // pred_region
          _
        $region24: #{tpu_custom_call.1} parent=11 // pred_fallthru
          _
        // Predicated region
        $region25: #{tpu_custom_call.1} parent=11 // pred_check
          %p174 = pneg %p124
        $region26: #{tpu_custom_call.1} parent=11 // pred_check_branch
          %176 = sbr.rel (%p174) target = $region28
        $region27: #{tpu_custom_call.1} parent=11 // pred_region
          _
        $region28: #{tpu_custom_call.1} parent=11 // pred_fallthru
          _
      $region12: #{tpu_custom_call.1} parent=5 // pred_fallthru
        _
      %p177 = scmp.lt.s32.totalorder %s14, 2
      // Predicated region
      $region29: #{tpu_custom_call.1} parent=5 // pred_check
        %p178 = pneg %p177
      $region30: #{tpu_custom_call.1} parent=5 // pred_check_branch
        %180 = sbr.rel (%p178) target = $region32
      $region31: #{tpu_custom_call.1} parent=5 // pred_region
        // Predicated region
        $region33: #{tpu_custom_call.1} parent=31 // pred_check
          %p181 = pneg %p34
        $region34: #{tpu_custom_call.1} parent=31 // pred_check_branch
          %183 = sbr.rel (%p181) target = $region36
        $region35: #{tpu_custom_call.1} parent=31 // pred_region
          %p184 = scmp.lt.s32.totalorder %s14, 1
          %s185 = scalar_select %p184, %s14, 1
          %s186 = smul.addr %s185, 8
          %s187 = scalar_lea.vmem %s0, %s186
        $region36: #{tpu_custom_call.1} parent=31 // pred_fallthru
          _
      $region32: #{tpu_custom_call.1} parent=5 // pred_fallthru
        _
      %p188 = scmp.le.s32.totalorder 1, %s14
      %p189 = scmp.lt.s32.totalorder %s14, 3
      %p190 = pnand %p188, %p189
      %p191 = pneg %p190
      // Predicated region
      $region37: #{tpu_custom_call.1} parent=5 // pred_check
        _
      $region38: #{tpu_custom_call.1} parent=5 // pred_check_branch
        %193 = sbr.rel (%p190) target = $region40
      $region39: #{tpu_custom_call.1} parent=5 // pred_region
        %s194 = ssub.s32 %s14, 1
        %p195 = scmp.lt.s32.totalorder %s19, 1
        %s196 = scalar_select %p195, %s19, 1
        %s197 = smul.addr %s196, 8
        %s198 = scalar_lea.vmem %s0, %s197
        %p199 = pneg %p40
        %p200 = pneg %p37
        %p201 = pneg %p61
        %p202 = pneg %p58
        %p203 = pneg %p82
        %p204 = pneg %p79
        %p205 = pneg %p103
        %p206 = pneg %p100
        %p207 = pneg %p124
        %p208 = pneg %p121
        %p209 = pneg %p150
        %p210 = pneg %p147
        %s211 = sand.u32 %s137, 1
        %s212 = scalar_lea.sflag [#allocation3], %s211
        %s213 = sand.u32 %s137, 1
        %s214 = smul.addr %s213, 8
        %s215 = scalar_lea.vmem [#allocation2], %s214
        %p216 = scmp.lt.s32.totalorder %s19, 1
        %s217 = scalar_select %p216, %s19, 1
        %s218 = smul.addr %s217, 8
        %s219 = scalar_lea.vmem %s0, %s218
        %v220 = vld [vmem:[%s219] sm:$0xff]
        %v221 = vld [vmem:[%s1] sm:$0xff]
        %v222 = vld [vmem:[%s1 + $0x8] sm:$0xff]
        %v223 = vld [vmem:[%s1 + $0x10] sm:$0xff]
        %v224 = vld [vmem:[%s1 + $0x18] sm:$0xff]
        %v225 = vld [vmem:[%s1 + $0x20] sm:$0xf]
        %v226 = vld [vmem:[%s1 + $0x28] sm:$0xf]
        %v227 = vld [vmem:[%s2] sm:$0x3]
        %v229 = vlaneseq
        %v230 = vshrl.u32 %v229, 7
        %v231 = vsub.s32 0, %v230
        %v232 = vrot.slane %v227, %v231
        %v233 = vlaneseq
        %v234 = vshrl.u32 %v233, 7
        %v235 = vsub.s32 1, %v234
        %v236 = vrot.slane %v227, %v235
        %vm239 = vcmask 162816
        %v241 = vsel %vm239, %v220, 0
        %vm243 = vcmask 1043456
        %v245 = vsel %vm243, %v225, 0
        %v248 = vsel %vm243, %v226, 0
        %250 = vmatprep.subr.mxu0 %v222
        %251 = vmatpush1.msra.mxu0 %v221
        %252 = vmatprep.subr.mxu0 %v224
        %253 = vmatpush1.msra.mxu0 %v223
        %254 = vmatprep.subr.mxu0 %v248
        %255 = vmatpush1.msra.mxu0 %v245
        %256 = vmatprep.subr.mxu0 0.0
        %257 = vmatpush1.msra.mxu0 0.0
        %258 = vmatprep.subr.mxu0 0.0
        %259 = vmatpush1.msra.mxu0 0.0
        %260 = vmatprep.subr.mxu0 0.0
        %261 = vmatpush1.msra.mxu0 0.0
        %262 = vmatprep.subr.mxu0 0.0
        %263 = vmatpush1.msra.mxu0 0.0
        %264 = vmatprep.subr.mxu0 0.0
        %265 = vmatpush1.msra.mxu0 0.0
        %266 = vmatprep.subr.mxu0 0.0
        %267 = vmatpush1.msra.mxu0 0.0
        %268 = vmatprep.subr.mxu0 0.0
        %269 = vmatpush1.msra.mxu0 0.0
        %270 = vmatprep.subr.mxu0 0.0
        %271 = vmatpush1.msra.mxu0 0.0
        %272 = vmatprep.subr.mxu0 0.0
        %273 = vmatpush1.msra.mxu0 0.0
        %274 = vmatprep.subr.mxu0 0.0
        %275 = vmatpush1.msra.mxu0 0.0
        %276 = vmatprep.subr.mxu0 0.0
        %277 = vmatpush1.msra.mxu0 0.0
        %278 = vmatprep.subr.mxu0 0.0
        %279 = vmatpush1.msra.mxu0 0.0
        %280 = vmatprep.subr.mxu0 0.0
        %281 = vmatpush1.msra.mxu0 0.0
        %282 = vmatprep.subr.mxu0 0.0
        %283 = vmatpush1.msra.mxu0 0.0
        %284 = vmatprep.subr.mxu0 0.0
        %285 = vmatpush1.msra.mxu0 0.0
        %286 = vmatprep.subr.mxu0 0.0
        %287 = vmatpush1.msra.mxu0 0.0
        %288 = vmatprep.subr.mxu0 0.0
        %289 = vmatpush1.msra.mxu0 0.0
        %290 = vmatprep.subr.mxu0 0.0
        %291 = vmatpush1.msra.mxu0 0.0
        %292 = vmatprep.subr.mxu0 0.0
        %293 = vmatpush1.msra.mxu0 0.0
        %294 = vmatprep.subr.mxu0 0.0
        %295 = vmatpush1.msra.mxu0 0.0
        %296 = vmatprep.subr.mxu0 0.0
        %297 = vmatpush1.msra.mxu0 0.0
        %298 = vmatprep.subr.mxu0 0.0
        %299 = vmatpush1.msra.mxu0 0.0
        %300 = vmatprep.subr.mxu0 0.0
        %301 = vmatpush1.msra.mxu0 0.0
        %302 = vmatprep.subr.mxu0 0.0
        %303 = vmatpush1.msra.mxu0 0.0
        %304 = vmatprep.subr.mxu0 0.0
        %305 = vmatpush1.msra.mxu0 0.0
        %306 = vmatprep.subr.mxu0 0.0
        %307 = vmatpush1.msra.mxu0 0.0
        %308 = vmatprep.subr.mxu0 0.0
        %309 = vmatpush1.msra.mxu0 0.0
        %310 = vmatprep.subr.mxu0 0.0
        %311 = vmatpush1.msra.mxu0 0.0
        %312 = vmatprep.subr.mxu0 0.0
        %313 = vmatpush1.msra.mxu0 0.0
        %314 = vmatprep.mubr.f32.mxu0 0.0
        %315 = vmatmul.mubr.f32.gmra.mrb[0].mxu0 %v241
        %v316 = vpop.f32.mrb[0].mxu0
        %v317 = vadd.f32 %v232, %v316
        %v318 = vpop.f32.mrb[0].mxu0
        %v319 = vadd.f32 %v236, %v318
        %320 = vdwg.mxu0
        %v321 = vmax.f32 %v317, 0.0
        %v322 = vmax.f32 %v319, 0.0
        %v323 = vld [vmem:[%s3] sm:$0xff]
        %v324 = vld [vmem:[%s3 + $0x8] sm:$0xff]
        %v325 = vld [vmem:[%s3 + $0x10] sm:$0xff]
        %v326 = vld [vmem:[%s3 + $0x18] sm:$0xff]
        %v327 = vld [vmem:[%s3 + $0x20] sm:$0xff]
        %v328 = vld [vmem:[%s3 + $0x28] sm:$0xff]
        %v329 = vld [vmem:[%s3 + $0x30] sm:$0xff]
        %v330 = vld [vmem:[%s3 + $0x38] sm:$0xff]
        %v331 = vld [vmem:[%s3 + $0x40] sm:$0xff]
        %v332 = vld [vmem:[%s3 + $0x48] sm:$0xff]
        %v333 = vld [vmem:[%s3 + $0x50] sm:$0xff]
        %v334 = vld [vmem:[%s3 + $0x58] sm:$0xff]
        %v335 = vld [vmem:[%s3 + $0x60] sm:$0xff]
        %v336 = vld [vmem:[%s3 + $0x68] sm:$0xff]
        %v337 = vld [vmem:[%s3 + $0x70] sm:$0xff]
        %v338 = vld [vmem:[%s3 + $0x78] sm:$0xff]
        %v339 = vld [vmem:[%s3 + $0x80] sm:$0xff]
        %v340 = vld [vmem:[%s3 + $0x88] sm:$0xff]
        %v341 = vld [vmem:[%s3 + $0x90] sm:$0xff]
        %v342 = vld [vmem:[%s3 + $0x98] sm:$0xff]
        %v343 = vld [vmem:[%s3 + $0xa0] sm:$0xff]
        %v344 = vld [vmem:[%s3 + $0xa8] sm:$0xff]
        %v345 = vld [vmem:[%s3 + $0xb0] sm:$0xff]
        %v346 = vld [vmem:[%s3 + $0xb8] sm:$0xff]
        %v347 = vld [vmem:[%s3 + $0xc0] sm:$0xff]
        %v348 = vld [vmem:[%s3 + $0xc8] sm:$0xff]
        %v349 = vld [vmem:[%s3 + $0xd0] sm:$0xff]
        %v350 = vld [vmem:[%s3 + $0xd8] sm:$0xff]
        %v351 = vld [vmem:[%s3 + $0xe0] sm:$0xff]
        %v352 = vld [vmem:[%s3 + $0xe8] sm:$0xff]
        %v353 = vld [vmem:[%s3 + $0xf0] sm:$0xff]
        %v354 = vld [vmem:[%s3 + $0xf8] sm:$0xff]
        %v355 = vld [vmem:[%s4] sm:$0x1]
        %v357 = vlaneseq
        %v358 = vshrl.u32 %v357, 7
        %v359 = vsub.s32 0, %v358
        %v360 = vrot.slane %v355, %v359
        %362 = vmatprep.subr.mxu0 0.0
        %363 = vmatpush1.msra.mxu0 %v323
        %364 = vmatprep.subr.mxu0 0.0
        %365 = vmatpush1.msra.mxu0 %v324
        %366 = vmatprep.subr.mxu0 0.0
        %367 = vmatpush1.msra.mxu0 %v325
        %368 = vmatprep.subr.mxu0 0.0
        %369 = vmatpush1.msra.mxu0 %v326
        %370 = vmatprep.subr.mxu0 0.0
        %371 = vmatpush1.msra.mxu0 %v327
        %372 = vmatprep.subr.mxu0 0.0
        %373 = vmatpush1.msra.mxu0 %v328
        %374 = vmatprep.subr.mxu0 0.0
        %375 = vmatpush1.msra.mxu0 %v329
        %376 = vmatprep.subr.mxu0 0.0
        %377 = vmatpush1.msra.mxu0 %v330
        %378 = vmatprep.subr.mxu0 0.0
        %379 = vmatpush1.msra.mxu0 %v331
        %380 = vmatprep.subr.mxu0 0.0
        %381 = vmatpush1.msra.mxu0 %v332
        %382 = vmatprep.subr.mxu0 0.0
        %383 = vmatpush1.msra.mxu0 %v333
        %384 = vmatprep.subr.mxu0 0.0
        %385 = vmatpush1.msra.mxu0 %v334
        %386 = vmatprep.subr.mxu0 0.0
        %387 = vmatpush1.msra.mxu0 %v335
        %388 = vmatprep.subr.mxu0 0.0
        %389 = vmatpush1.msra.mxu0 %v336
        %390 = vmatprep.subr.mxu0 0.0
        %391 = vmatpush1.msra.mxu0 %v337
        %392 = vmatprep.subr.mxu0 0.0
        %393 = vmatpush1.msra.mxu0 %v338
        %394 = vmatprep.subr.mxu0 0.0
        %395 = vmatpush1.msra.mxu0 %v339
        %396 = vmatprep.subr.mxu0 0.0
        %397 = vmatpush1.msra.mxu0 %v340
        %398 = vmatprep.subr.mxu0 0.0
        %399 = vmatpush1.msra.mxu0 %v341
        %400 = vmatprep.subr.mxu0 0.0
        %401 = vmatpush1.msra.mxu0 %v342
        %402 = vmatprep.subr.mxu0 0.0
        %403 = vmatpush1.msra.mxu0 %v343
        %404 = vmatprep.subr.mxu0 0.0
        %405 = vmatpush1.msra.mxu0 %v344
        %406 = vmatprep.subr.mxu0 0.0
        %407 = vmatpush1.msra.mxu0 %v345
        %408 = vmatprep.subr.mxu0 0.0
        %409 = vmatpush1.msra.mxu0 %v346
        %410 = vmatprep.subr.mxu0 0.0
        %411 = vmatpush1.msra.mxu0 %v347
        %412 = vmatprep.subr.mxu0 0.0
        %413 = vmatpush1.msra.mxu0 %v348
        %414 = vmatprep.subr.mxu0 0.0
        %415 = vmatpush1.msra.mxu0 %v349
        %416 = vmatprep.subr.mxu0 0.0
        %417 = vmatpush1.msra.mxu0 %v350
        %418 = vmatprep.subr.mxu0 0.0
        %419 = vmatpush1.msra.mxu0 %v351
        %420 = vmatprep.subr.mxu0 0.0
        %421 = vmatpush1.msra.mxu0 %v352
        %422 = vmatprep.subr.mxu0 0.0
        %423 = vmatpush1.msra.mxu0 %v353
        %424 = vmatprep.subr.mxu0 0.0
        %425 = vmatpush1.msra.mxu0 %v354
        %426 = vmatprep.mubr.f32.mxu0 %v322
        %427 = vmatmul.mubr.f32.gmra.mrb[0].mxu0 %v321
        %v428 = vpop.f32.mrb[0].mxu0
        %v429 = vadd.f32 %v360, %v428
        %v430 = vpop.f32.mrb[0].mxu0
        %431 = vdwg.mxu0
        %vm432 = vcmask 80896
        %433 = vst.msk [vmem:[%s215] sm:$0xff] %vm432, %v429
        %s434 = sand.u32 %s137, 1
        %s435 = scalar_lea.sflag [#allocation3], %s434
        %s436 = sand.u32 %s137, 1
        %s437 = smul.addr %s436, 8
        %s438 = scalar_lea.vmem [#allocation2], %s437
        // Predicated region
        $region41: #{tpu_custom_call.1} parent=39 // pred_check
          %p439 = pneg %p147
        $region42: #{tpu_custom_call.1} parent=39 // pred_check_branch
          %441 = sbr.rel (%p439) target = $region44
        $region43: #{tpu_custom_call.1} parent=39 // pred_region
          %s443 = ssub.s32 128, 128
          %444 = vsyncadd %s435, %s443
          %s445 = smul.addr %s19, 128
          %s446 = scalar_lea.hbm %s5, %s445
          %s448 = sshll.u32 %s438, 4
          %s449 = int_to_ptr.vmem [resolvable:$true] %s448
          %451 = dma.vmem_to_hbm [thread:$0]  %s449, 128, %s446, %s435
        $region44: #{tpu_custom_call.1} parent=39 // pred_fallthru
          _
      $region40: #{tpu_custom_call.1} parent=5 // pred_fallthru
        _
      %p452 = scmp.le.s32.totalorder 2, %s14
      // Predicated region
      $region45: #{tpu_custom_call.1} parent=5 // pred_check
        %p453 = pneg %p452
      $region46: #{tpu_custom_call.1} parent=5 // pred_check_branch
        %455 = sbr.rel (%p453) target = $region48
      $region47: #{tpu_custom_call.1} parent=5 // pred_region
        %s456 = ssub.s32 %s14, 2
        // Predicated region
        $region49: #{tpu_custom_call.1} parent=47 // pred_check
          %p457 = pneg %p153
        $region50: #{tpu_custom_call.1} parent=47 // pred_check_branch
          %459 = sbr.rel (%p457) target = $region52
        $region51: #{tpu_custom_call.1} parent=47 // pred_region
          %s460 = sand.u32 %s138, 1
          %s461 = scalar_lea.sflag [#allocation3], %s460
          %s462 = sand.u32 %s138, 1
          %s463 = smul.addr %s462, 8
          %s464 = scalar_lea.vmem [#allocation2], %s463
          %465 = dma.done %s461, 128
        $region52: #{tpu_custom_call.1} parent=47 // pred_fallthru
          _
      $region48: #{tpu_custom_call.1} parent=5 // pred_fallthru
        _
    $region6: #{tpu_custom_call.1} parent=1 // loop_footer
      %s18 = sadd.s32 1, %s14
    $region7: #{tpu_custom_call.1} parent=1 // loop_footer_branch
      %13 = sbr.rel target = $region3
    $region8: #{tpu_custom_call.1} parent=1 // loop_exit
      _
    %466 = vsyncpa [#allocation3], 1
    %s467 = scalar_lea.sflag [#allocation3], 1
    %468 = vsyncpa %s467, 1

</llo_original>
